<compile_context>
chip_gen: v5e
topology: v5e:2x2
jax: 0.10.0
libtpu: 0.0.40
codegen_flags: <defaults>
</compile_context>

<pallas_src>
import functools

import jax
import jax.numpy as jnp
from jax.experimental import pallas as pl
from jax.experimental.pallas import tpu as pltpu

LANE = 128     # TPU lane width (last dim)
SUBLANE = 8    # TPU sublane width for f32 (second-to-last dim)


def _round_up(x, m):
    return ((x + m - 1) // m) * m


def _pad2d(a, rows, cols):
    return jnp.pad(a, ((0, rows - a.shape[0]), (0, cols - a.shape[1])))


def dueling_dqn_kernel(
    x_ref,
    w1_ref, b1_ref,
    w2_ref, b2_ref,
    wva_ref, bva_ref,
    whead_ref, bhead_ref,
    out_ref,
):
    """Per-batch-tile body: 4 MXU passes, f32 accumulation, lane-dense store.

    All dueling-specific work is pre-folded into whead/bhead, so there is no
    slicing, masking or cross-lane reduction here and no batch-size constants.
    """
    mxu_dtype = w1_ref.dtype            # bf16 (default) or f32
    x = x_ref[...]                      # already in mxu_dtype

    # ---- feature trunk: Linear -> ReLU -> Linear -> ReLU ----
    h = jnp.dot(x, w1_ref[...], preferred_element_type=jnp.float32) + b1_ref[...]
    h = jnp.maximum(h, 0.0)
    h = jnp.dot(h.astype(mxu_dtype), w2_ref[...],
                preferred_element_type=jnp.float32) + b2_ref[...]
    h = jnp.maximum(h, 0.0)

    # ---- fused value|advantage hidden layer (one MXU pass) ----
    hva = jnp.dot(h.astype(mxu_dtype), wva_ref[...],
                  preferred_element_type=jnp.float32) + bva_ref[...]
    hva = jnp.maximum(hva, 0.0)

    # ---- fused head (one MXU pass) ----
    # columns [0, O): a + v          (value weights broadcast into every column)
    # column  O     : sum_j a[:, j]  (per-row advantage sum, for the global mean)
    # columns > O   : zero padding
    out_ref[...] = (jnp.dot(hva.astype(mxu_dtype), whead_ref[...],
                            preferred_element_type=jnp.float32) + bhead_ref[...])


def prepare_params(params, input_size, hidden_size, output_size,
                   mxu_dtype=jnp.bfloat16):
    """One-time (load-time) weight preprocessing.

    Pads all operands to (8,128)-aligned shapes, fuses the value/advantage
    streams, folds the dueling combine into the head weights, and casts the
    weight matrices to the MXU dtype (bf16 by default; biases stay f32).
    Call once and reuse the result across forward steps.
    """
    K1 = _round_up(input_size, LANE)
    H = _round_up(hidden_size, LANE)
    N = _round_up(output_size + 1, LANE)   # O fused q-cols + 1 adv-sum col, lane-dense
    O = output_size

    w1 = _pad2d(params["w1"], K1, H)
    b1 = _pad2d(params["b1"], 1, H)
    w2 = _pad2d(params["w2"], H, H)
    b2 = _pad2d(params["b2"], 1, H)

    # Fused hidden layer of both streams: h @ [Wv1 | Wa1].
    wva = jnp.concatenate(
        [_pad2d(params["wv1"], H, H), _pad2d(params["wa1"], H, H)], axis=1)   # (H, 2H)
    bva = jnp.concatenate(
        [_pad2d(params["bv1"], 1, H), _pad2d(params["ba1"], 1, H)], axis=1)   # (1, 2H)

    # Head with the dueling combine folded in:
    #   rows [0, hidden)     <- value-stream hidden units
    #   rows [H, H + hidden) <- advantage-stream hidden units
    whead = jnp.zeros((2 * H, N), jnp.float32)
    whead = whead.at[0:hidden_size, 0:O].set(
        jnp.broadcast_to(params["wv2"], (hidden_size, O)))          # + v in every q col
    whead = whead.at[H:H + hidden_size, 0:O].set(params["wa2"])     # + a[:, j]
    whead = whead.at[H:H + hidden_size, O:O + 1].set(
        jnp.sum(params["wa2"], axis=1, keepdims=True))              # per-row adv sum
    bhead = jnp.zeros((1, N), jnp.float32)
    bhead = bhead.at[:, 0:O].set(params["ba2"] + params["bv2"])
    bhead = bhead.at[:, O:O + 1].set(jnp.sum(params["ba2"], axis=1, keepdims=True))

    return dict(
        w1=w1.astype(mxu_dtype), b1=b1.astype(jnp.float32),
        w2=w2.astype(mxu_dtype), b2=b2.astype(jnp.float32),
        wva=wva.astype(mxu_dtype), bva=bva.astype(jnp.float32),
        whead=whead.astype(mxu_dtype), bhead=bhead.astype(jnp.float32),
    )


def dueling_dqn_forward(x, weights, *, output_size, row_tile=256,
                        single_buffer_weights=False):
    """x: (B, input_size). weights: output of prepare_params. Jit-able."""
    B = x.shape[0]
    O = output_size
    K1, H = weights["w1"].shape
    N = weights["whead"].shape[1]
    mxu_dtype = weights["w1"].dtype

    # Real batch grid: fixed row tile, clamped to the padded batch.
    TB = min(_round_up(row_tile, SUBLANE), max(SUBLANE, _round_up(B, SUBLANE)))
    B_pad = _round_up(max(B, TB), TB)
    num_tiles = B_pad // TB

    x_p = _pad2d(x.astype(mxu_dtype), B_pad, K1)

    def batch_spec(block_shape):
        # batch-tiled operand (x / out): block index follows the grid.
        return pl.BlockSpec(block_shape, lambda i: (i, 0),
                            memory_space=pltpu.MemorySpace.VMEM)

    def weight_spec(a):
        # VMEM-resident weight: constant block index across all grid steps.
        if single_buffer_weights:
            # Block-invariant -> single-buffering halves weight VMEM at zero
            # perf cost (useful for hidden >= ~1.5K on v7x's 64 MiB VMEM).
            return pl.BlockSpec(a.shape, lambda i: (0, 0),
                                memory_space=pltpu.MemorySpace.VMEM,
                                pipeline_mode=pl.Buffered(1))
        return pl.BlockSpec(a.shape, lambda i: (0, 0),
                            memory_space=pltpu.MemorySpace.VMEM)

    w_list = [weights[k] for k in
              ("w1", "b1", "w2", "b2", "wva", "bva", "whead", "bhead")]

    # Right-size the VMEM request from the actual buffers (x2 margin), capped
    # well inside v7x's 64 MiB physical VMEM.
    w_buffers = 1 if single_buffer_weights else 2
    weight_bytes = sum(a.size * a.dtype.itemsize for a in w_list)
    io_bytes = TB * K1 * x_p.dtype.itemsize + TB * N * 4
    vmem_need = w_buffers * weight_bytes + 2 * io_bytes
    vmem_limit = int(min(max(2 * vmem_need + (1 << 20), 4 << 20), 48 << 20))
    # TODO(synk): for hidden sizes where the resident weights alone approach the
    # cap, tile wva/whead over an extra grid axis instead of raising the limit.

    head = pl.pallas_call(
        dueling_dqn_kernel,
        out_shape=jax.ShapeDtypeStruct((B_pad, N), jnp.float32),
        grid=(num_tiles,),
        in_specs=[batch_spec((TB, K1))] + [weight_spec(a) for a in w_list],
        out_specs=batch_spec((TB, N)),
        compiler_params=pltpu.CompilerParams(
            # Parallel batch axis: no-op on single-TC v5e/v6e, shards across
            # the two TensorCores on v7x once num_tiles > 1.
            dimension_semantics=("parallel",),
            vmem_limit_bytes=vmem_limit,
        ),
    )(x_p, *w_list)

    # Trivial XLA epilogue: global advantage mean (decoupled from the tile loop
    # so batch tiles are fully independent).  head[:, :O] already equals a + v;
    # head[:, O] is the per-row advantage sum.
    adv_mean = jnp.sum(head[:B, O]) / float(B * O)
    return head[:B, :O] - adv_mean


def init_params(key, input_size, hidden_size, output_size):
    """PyTorch-Linear-style init. Weights stored transposed (in, out); biases (1, out)."""
    def linear(key, fan_in, fan_out):
        kw, kb = jax.random.split(key)
        bound = 1.0 / jnp.sqrt(jnp.float32(fan_in))
        w = jax.random.uniform(kw, (fan_in, fan_out), jnp.float32, -bound, bound)
        b = jax.random.uniform(kb, (1, fan_out), jnp.float32, -bound, bound)
        return w, b

    keys = jax.random.split(key, 6)
    w1, b1 = linear(keys[0], input_size, hidden_size)
    w2, b2 = linear(keys[1], hidden_size, hidden_size)
    wv1, bv1 = linear(keys[2], hidden_size, hidden_size)
    wv2, bv2 = linear(keys[3], hidden_size, 1)
    wa1, ba1 = linear(keys[4], hidden_size, hidden_size)
    wa2, ba2 = linear(keys[5], hidden_size, output_size)
    return dict(
        w1=w1, b1=b1, w2=w2, b2=b2,
        wv1=wv1, bv1=bv1, wv2=wv2, bv2=bv2,
        wa1=wa1, ba1=ba1, wa2=wa2, ba2=ba2,
    )


def reference_forward(x, p):
    """Pure-JAX reference mirroring the PyTorch forward (f32 everywhere)."""
    h = jnp.maximum(x @ p["w1"] + p["b1"], 0.0)
    h = jnp.maximum(h @ p["w2"] + p["b2"], 0.0)
    v = jnp.maximum(h @ p["wv1"] + p["bv1"], 0.0) @ p["wv2"] + p["bv2"]
    a = jnp.maximum(h @ p["wa1"] + p["ba1"], 0.0) @ p["wa2"] + p["ba2"]
    return v + (a - a.mean())


if __name__ == "__main__":
    batch = 2
    input_size = 16
    hidden_size = 32
    output_size = 8

    key = jax.random.PRNGKey(0)
    k_x, k_p = jax.random.split(key)

    x = jax.random.normal(k_x, (batch, input_size), jnp.float32)
    params = init_params(k_p, input_size, hidden_size, output_size)
    q_ref = reference_forward(x, params)

    # --- f32 MXU path: verifies exact semantics vs the pure-JAX reference ---
    prep_f32 = prepare_params(params, input_size, hidden_size, output_size,
                              mxu_dtype=jnp.float32)
    fwd = jax.jit(functools.partial(dueling_dqn_forward, output_size=output_size))
    q_f32 = jax.block_until_ready(fwd(x, prep_f32))
    assert q_f32.shape == (batch, output_size)
    assert jnp.allclose(q_f32, q_ref, atol=1e-5, rtol=1e-5), "f32 kernel mismatch"

    # --- bf16 MXU path (default performance config): looser tolerance ---
    prep_bf16 = prepare_params(params, input_size, hidden_size, output_size)
    q_bf16 = jax.block_until_ready(fwd(x, prep_bf16))
    assert q_bf16.shape == (batch, output_size)
    assert jnp.allclose(q_bf16, q_ref, atol=5e-2, rtol=5e-2), "bf16 kernel mismatch"

    print("KERNEL_OK")
</pallas_src>

<mosaic_0001>
module attributes {stable_mosaic.version = 11 : i64} {
  func.func @dueling_dqn_kernel(%arg0: i32, %arg1: memref<8x128xf32, #tpu.memory_space<vmem>>, %arg2: memref<128x128xf32, #tpu.memory_space<vmem>>, %arg3: memref<1x128xf32, #tpu.memory_space<vmem>>, %arg4: memref<128x128xf32, #tpu.memory_space<vmem>>, %arg5: memref<1x128xf32, #tpu.memory_space<vmem>>, %arg6: memref<128x256xf32, #tpu.memory_space<vmem>>, %arg7: memref<1x256xf32, #tpu.memory_space<vmem>>, %arg8: memref<256x128xf32, #tpu.memory_space<vmem>>, %arg9: memref<1x128xf32, #tpu.memory_space<vmem>>, %arg10: memref<8x128xf32, #tpu.memory_space<vmem>>) attributes {dimension_semantics = [#tpu.dimension_semantics<parallel>], iteration_bounds = array<i64: 1>, scalar_prefetch = 0 : i64, scratch_operands = 0 : i64, tpu.core_type = #tpu.core_type<tc>, window_params = [{transform_indices = @transform_0, window_bounds = array<i64: 8, 128>}, {pipeline_mode = #tpu.pipeline_mode<synchronous>, transform_indices = @transform_1, window_bounds = array<i64: 128, 128>}, {pipeline_mode = #tpu.pipeline_mode<synchronous>, transform_indices = @transform_2, window_bounds = array<i64: 1, 128>}, {pipeline_mode = #tpu.pipeline_mode<synchronous>, transform_indices = @transform_3, window_bounds = array<i64: 128, 128>}, {pipeline_mode = #tpu.pipeline_mode<synchronous>, transform_indices = @transform_4, window_bounds = array<i64: 1, 128>}, {pipeline_mode = #tpu.pipeline_mode<synchronous>, transform_indices = @transform_5, window_bounds = array<i64: 128, 256>}, {pipeline_mode = #tpu.pipeline_mode<synchronous>, transform_indices = @transform_6, window_bounds = array<i64: 1, 256>}, {pipeline_mode = #tpu.pipeline_mode<synchronous>, transform_indices = @transform_7, window_bounds = array<i64: 256, 128>}, {pipeline_mode = #tpu.pipeline_mode<synchronous>, transform_indices = @transform_8, window_bounds = array<i64: 1, 128>}, {transform_indices = @transform_9, window_bounds = array<i64: 8, 128>}]} {
    %c0 = arith.constant 0 : index
    %c0_0 = arith.constant 0 : index
    %0 = vector.load %arg1[%c0, %c0_0] : memref<8x128xf32, #tpu.memory_space<vmem>>, vector<8x128xf32>
    %c0_1 = arith.constant 0 : index
    %c0_2 = arith.constant 0 : index
    %1 = vector.load %arg2[%c0_1, %c0_2] : memref<128x128xf32, #tpu.memory_space<vmem>>, vector<128x128xf32>
    %cst = arith.constant dense<0.000000e+00> : vector<8x128xf32>
    %2 = tpu.matmul %0, %1, %cst {dimension_numbers = #tpu.dot_dimension_numbers<[1], [0], [0], [1], [0, 0, 1, 1], [], []>} : vector<8x128xf32>, vector<128x128xf32>, vector<8x128xf32> -> vector<8x128xf32>
    %c0_3 = arith.constant 0 : index
    %c0_4 = arith.constant 0 : index
    %3 = vector.load %arg3[%c0_3, %c0_4] : memref<1x128xf32, #tpu.memory_space<vmem>>, vector<1x128xf32>
    %4 = vector.broadcast %3 : vector<1x128xf32> to vector<8x128xf32>
    %5 = arith.addf %2, %4 : vector<8x128xf32>
    %cst_5 = arith.constant 0.000000e+00 : f32
    %6 = vector.broadcast %cst_5 : f32 to vector<8x128xf32>
    %7 = arith.maximumf %5, %6 : vector<8x128xf32>
    %c0_6 = arith.constant 0 : index
    %c0_7 = arith.constant 0 : index
    %8 = vector.load %arg4[%c0_6, %c0_7] : memref<128x128xf32, #tpu.memory_space<vmem>>, vector<128x128xf32>
    %cst_8 = arith.constant dense<0.000000e+00> : vector<8x128xf32>
    %9 = tpu.matmul %7, %8, %cst_8 {dimension_numbers = #tpu.dot_dimension_numbers<[1], [0], [0], [1], [0, 0, 1, 1], [], []>} : vector<8x128xf32>, vector<128x128xf32>, vector<8x128xf32> -> vector<8x128xf32>
    %c0_9 = arith.constant 0 : index
    %c0_10 = arith.constant 0 : index
    %10 = vector.load %arg5[%c0_9, %c0_10] : memref<1x128xf32, #tpu.memory_space<vmem>>, vector<1x128xf32>
    %11 = vector.broadcast %10 : vector<1x128xf32> to vector<8x128xf32>
    %12 = arith.addf %9, %11 : vector<8x128xf32>
    %cst_11 = arith.constant 0.000000e+00 : f32
    %13 = vector.broadcast %cst_11 : f32 to vector<8x128xf32>
    %14 = arith.maximumf %12, %13 : vector<8x128xf32>
    %c0_12 = arith.constant 0 : index
    %c0_13 = arith.constant 0 : index
    %15 = vector.load %arg6[%c0_12, %c0_13] : memref<128x256xf32, #tpu.memory_space<vmem>>, vector<128x256xf32>
    %cst_14 = arith.constant dense<0.000000e+00> : vector<8x256xf32>
    %16 = tpu.matmul %14, %15, %cst_14 {dimension_numbers = #tpu.dot_dimension_numbers<[1], [0], [0], [1], [0, 0, 1, 1], [], []>} : vector<8x128xf32>, vector<128x256xf32>, vector<8x256xf32> -> vector<8x256xf32>
    %c0_15 = arith.constant 0 : index
    %c0_16 = arith.constant 0 : index
    %17 = vector.load %arg7[%c0_15, %c0_16] : memref<1x256xf32, #tpu.memory_space<vmem>>, vector<1x256xf32>
    %18 = vector.broadcast %17 : vector<1x256xf32> to vector<8x256xf32>
    %19 = arith.addf %16, %18 : vector<8x256xf32>
    %cst_17 = arith.constant 0.000000e+00 : f32
    %20 = vector.broadcast %cst_17 : f32 to vector<8x256xf32>
    %21 = arith.maximumf %19, %20 : vector<8x256xf32>
    %c0_18 = arith.constant 0 : index
    %c0_19 = arith.constant 0 : index
    %22 = vector.load %arg8[%c0_18, %c0_19] : memref<256x128xf32, #tpu.memory_space<vmem>>, vector<256x128xf32>
    %cst_20 = arith.constant dense<0.000000e+00> : vector<8x128xf32>
    %23 = tpu.matmul %21, %22, %cst_20 {dimension_numbers = #tpu.dot_dimension_numbers<[1], [0], [0], [1], [0, 0, 1, 1], [], []>} : vector<8x256xf32>, vector<256x128xf32>, vector<8x128xf32> -> vector<8x128xf32>
    %c0_21 = arith.constant 0 : index
    %c0_22 = arith.constant 0 : index
    %24 = vector.load %arg9[%c0_21, %c0_22] : memref<1x128xf32, #tpu.memory_space<vmem>>, vector<1x128xf32>
    %25 = vector.broadcast %24 : vector<1x128xf32> to vector<8x128xf32>
    %26 = arith.addf %23, %25 : vector<8x128xf32>
    %c0_23 = arith.constant 0 : index
    %c0_24 = arith.constant 0 : index
    %27 = vector.load %arg10[%c0_23, %c0_24] : memref<8x128xf32, #tpu.memory_space<vmem>>, vector<8x128xf32>
    tpu.vector_store %arg10[%c0_23, %c0_24], %26 {strides = array<i32>} : memref<8x128xf32, #tpu.memory_space<vmem>>, vector<8x128xf32>,
    return
  }
  func.func @transform_0(%arg0: i32) -> (i32, i32) {
    %c0_i32 = arith.constant 0 : i32
    %c0_i32_0 = arith.constant 0 : i32
    return %arg0, %c0_i32 : i32, i32
  }
  func.func @transform_1(%arg0: i32) -> (i32, i32) {
    %c0_i32 = arith.constant 0 : i32
    %c0_i32_0 = arith.constant 0 : i32
    %c0_i32_1 = arith.constant 0 : i32
    return %c0_i32, %c0_i32_0 : i32, i32
  }
  func.func @transform_2(%arg0: i32) -> (i32, i32) {
    %c0_i32 = arith.constant 0 : i32
    %c0_i32_0 = arith.constant 0 : i32
    %c0_i32_1 = arith.constant 0 : i32
    return %c0_i32, %c0_i32_0 : i32, i32
  }
  func.func @transform_3(%arg0: i32) -> (i32, i32) {
    %c0_i32 = arith.constant 0 : i32
    %c0_i32_0 = arith.constant 0 : i32
    %c0_i32_1 = arith.constant 0 : i32
    return %c0_i32, %c0_i32_0 : i32, i32
  }
  func.func @transform_4(%arg0: i32) -> (i32, i32) {
    %c0_i32 = arith.constant 0 : i32
    %c0_i32_0 = arith.constant 0 : i32
    %c0_i32_1 = arith.constant 0 : i32
    return %c0_i32, %c0_i32_0 : i32, i32
  }
  func.func @transform_5(%arg0: i32) -> (i32, i32) {
    %c0_i32 = arith.constant 0 : i32
    %c0_i32_0 = arith.constant 0 : i32
    %c0_i32_1 = arith.constant 0 : i32
    return %c0_i32, %c0_i32_0 : i32, i32
  }
  func.func @transform_6(%arg0: i32) -> (i32, i32) {
    %c0_i32 = arith.constant 0 : i32
    %c0_i32_0 = arith.constant 0 : i32
    %c0_i32_1 = arith.constant 0 : i32
    return %c0_i32, %c0_i32_0 : i32, i32
  }
  func.func @transform_7(%arg0: i32) -> (i32, i32) {
    %c0_i32 = arith.constant 0 : i32
    %c0_i32_0 = arith.constant 0 : i32
    %c0_i32_1 = arith.constant 0 : i32
    return %c0_i32, %c0_i32_0 : i32, i32
  }
  func.func @transform_8(%arg0: i32) -> (i32, i32) {
    %c0_i32 = arith.constant 0 : i32
    %c0_i32_0 = arith.constant 0 : i32
    %c0_i32_1 = arith.constant 0 : i32
    return %c0_i32, %c0_i32_0 : i32, i32
  }
  func.func @transform_9(%arg0: i32) -> (i32, i32) {
    %c0_i32 = arith.constant 0 : i32
    %c0_i32_0 = arith.constant 0 : i32
    return %arg0, %c0_i32 : i32, i32
  }
}

</mosaic_0001>

<llo_original>
// kernel: dueling_dqn_forward.1
$region0: #{dueling_dqn_forward.1}
  #allocation0 [shape = 'u32[]', space=smem, size = 0x4, offset = 0x4, fixed_abs, tag = 'smem constant byte address 0x4 - core index']
  #allocation1 [shape = 'u32[72,128]{1,0:T(1,128)}', space=vmem, size = 0x9000, scoped, tag = 'internal scratch']
  %s0 = inlined_call_operand.vmem [shape: f32[8,128], index: 0, kind: input, shape index: {}]
  %s1 = inlined_call_operand.hbm [shape: f32[128,128], index: 1, kind: input, shape index: {}]
  %s2 = inlined_call_operand.vmem [shape: f32[1,128], index: 2, kind: input, shape index: {}]
  %s3 = inlined_call_operand.hbm [shape: f32[128,128], index: 3, kind: input, shape index: {}]
  %s4 = inlined_call_operand.vmem [shape: f32[1,128], index: 4, kind: input, shape index: {}]
  %s5 = inlined_call_operand.hbm [shape: f32[128,256], index: 5, kind: input, shape index: {}]
  %s6 = inlined_call_operand.vmem [shape: f32[1,256], index: 6, kind: input, shape index: {}]
  %s7 = inlined_call_operand.hbm [shape: f32[256,128], index: 7, kind: input, shape index: {}]
  %s8 = inlined_call_operand.vmem [shape: f32[1,128], index: 8, kind: input, shape index: {}]
  %s9 = inlined_call_operand.vmem [shape: f32[8,128], index: 9, kind: output, shape index: {}]
  %s10 = sld [smem:[#allocation0]]
  $region62: #{dueling_dqn_forward.1} parent=0
    _
  %s12 = ssub.s32 1, %s10
  %s13 = scalar_select 0, %s12, %s10
  $region1: #{dueling_dqn_forward.1} parent=0
    #allocation2 [shape = 'u8[65536]{0}', space=vmem, size = 0x10000, scoped, tag = 'input window, operand 1, single buffered']
    #allocation3 [shape = 's32[1]{0}', space=sflag, size = 0x4, scoped, tag = 'scoped memory for dueling_dqn_forward.1']
    #allocation4 [shape = 'u8[65536]{0}', space=vmem, size = 0x10000, scoped, tag = 'input window, operand 3, single buffered']
    #allocation5 [shape = 's32[1]{0}', space=sflag, size = 0x4, scoped, tag = 'scoped memory for dueling_dqn_forward.1']
    #allocation6 [shape = 'u8[131072]{0}', space=vmem, size = 0x20000, scoped, tag = 'input window, operand 5, single buffered']
    #allocation7 [shape = 'u8[131072]{0}', space=vmem, size = 0x20000, scoped, tag = 'input window, operand 7, single buffered']
    #allocation8 [shape = 's32[1]{0}', space=sflag, size = 0x4, scoped, tag = 'scoped memory for dueling_dqn_forward.1']
    %14 = vsyncpa [#allocation3], 0
    %15 = vsyncpa [#allocation5], 0
    %16 = vsyncpa [#allocation8], 0
    // Predicated region
    $region2: #{dueling_dqn_forward.1} parent=1 // pred_check
      _
    $region3: #{dueling_dqn_forward.1} parent=1 // pred_check_branch
      %18 = sbr.rel (0) target = $region5
    $region4: #{dueling_dqn_forward.1} parent=1 // pred_region
      _
    $region5: #{dueling_dqn_forward.1} parent=1 // pred_fallthru
      _
    // Predicated region
    $region6: #{dueling_dqn_forward.1} parent=1 // pred_check
      _
    $region7: #{dueling_dqn_forward.1} parent=1 // pred_check_branch
      %20 = sbr.rel (0) target = $region9
    $region8: #{dueling_dqn_forward.1} parent=1 // pred_region
      %22 = vsyncadd [#allocation3], 0
      %s23 = sshll.u32 %s1, 4
      %s24 = int_to_ptr.hbm [resolvable:$true] %s23
      %s25 = sshll.u32 [#allocation2], 4
      %s26 = int_to_ptr.vmem [resolvable:$true] %s25
      %31 = dma.hbm_to_vmem [thread:$0]  %s24, 2048, %s26, [#allocation3], 128, 128, 8
    $region9: #{dueling_dqn_forward.1} parent=1 // pred_fallthru
      _
    // Predicated region
    $region10: #{dueling_dqn_forward.1} parent=1 // pred_check
      _
    $region11: #{dueling_dqn_forward.1} parent=1 // pred_check_branch
      %33 = sbr.rel (0) target = $region13
    $region12: #{dueling_dqn_forward.1} parent=1 // pred_region
      _
    $region13: #{dueling_dqn_forward.1} parent=1 // pred_fallthru
      _
    // Predicated region
    $region14: #{dueling_dqn_forward.1} parent=1 // pred_check
      _
    $region15: #{dueling_dqn_forward.1} parent=1 // pred_check_branch
      %35 = sbr.rel (0) target = $region17
    $region16: #{dueling_dqn_forward.1} parent=1 // pred_region
      %37 = vsyncadd [#allocation5], 0
      %s38 = sshll.u32 %s3, 4
      %s39 = int_to_ptr.hbm [resolvable:$true] %s38
      %s40 = sshll.u32 [#allocation4], 4
      %s41 = int_to_ptr.vmem [resolvable:$true] %s40
      %46 = dma.hbm_to_vmem [thread:$0]  %s39, 2048, %s41, [#allocation5], 128, 128, 8
    $region17: #{dueling_dqn_forward.1} parent=1 // pred_fallthru
      _
    // Predicated region
    $region18: #{dueling_dqn_forward.1} parent=1 // pred_check
      _
    $region19: #{dueling_dqn_forward.1} parent=1 // pred_check_branch
      %48 = sbr.rel (0) target = $region21
    $region20: #{dueling_dqn_forward.1} parent=1 // pred_region
      _
    $region21: #{dueling_dqn_forward.1} parent=1 // pred_fallthru
      _
    // Predicated region
    $region22: #{dueling_dqn_forward.1} parent=1 // pred_check
      _
    $region23: #{dueling_dqn_forward.1} parent=1 // pred_check_branch
      %50 = sbr.rel (0) target = $region25
    $region24: #{dueling_dqn_forward.1} parent=1 // pred_region
      %52 = vsyncadd [#allocation5], 0
      %s53 = sshll.u32 %s5, 4
      %s54 = int_to_ptr.hbm [resolvable:$true] %s53
      %s55 = sshll.u32 [#allocation6], 4
      %s56 = int_to_ptr.vmem [resolvable:$true] %s55
      %61 = dma.hbm_to_vmem [thread:$0]  %s54, 4096, %s56, [#allocation5], 256, 256, 16
    $region25: #{dueling_dqn_forward.1} parent=1 // pred_fallthru
      _
    // Predicated region
    $region26: #{dueling_dqn_forward.1} parent=1 // pred_check
      _
    $region27: #{dueling_dqn_forward.1} parent=1 // pred_check_branch
      %63 = sbr.rel (0) target = $region29
    $region28: #{dueling_dqn_forward.1} parent=1 // pred_region
      _
    $region29: #{dueling_dqn_forward.1} parent=1 // pred_fallthru
      _
    // Predicated region
    $region30: #{dueling_dqn_forward.1} parent=1 // pred_check
      _
    $region31: #{dueling_dqn_forward.1} parent=1 // pred_check_branch
      %65 = sbr.rel (0) target = $region33
    $region32: #{dueling_dqn_forward.1} parent=1 // pred_region
      %67 = vsyncadd [#allocation8], 0
      %s68 = sshll.u32 %s7, 4
      %s69 = int_to_ptr.hbm [resolvable:$true] %s68
      %s70 = sshll.u32 [#allocation7], 4
      %s71 = int_to_ptr.vmem [resolvable:$true] %s70
      %76 = dma.hbm_to_vmem [thread:$0]  %s69, 4096, %s71, [#allocation8], 128, 128, 8
    $region33: #{dueling_dqn_forward.1} parent=1 // pred_fallthru
      _
    // Predicated region
    $region34: #{dueling_dqn_forward.1} parent=1 // pred_check
      _
    $region35: #{dueling_dqn_forward.1} parent=1 // pred_check_branch
      %78 = sbr.rel (0) target = $region37
    $region36: #{dueling_dqn_forward.1} parent=1 // pred_region
      _
    $region37: #{dueling_dqn_forward.1} parent=1 // pred_fallthru
      _
    // Predicated region
    $region38: #{dueling_dqn_forward.1} parent=1 // pred_check
      _
    $region39: #{dueling_dqn_forward.1} parent=1 // pred_check_branch
      %80 = sbr.rel (0) target = $region41
    $region40: #{dueling_dqn_forward.1} parent=1 // pred_region
      %82 = dma.done [#allocation3], 2048
    $region41: #{dueling_dqn_forward.1} parent=1 // pred_fallthru
      _
    // Predicated region
    $region42: #{dueling_dqn_forward.1} parent=1 // pred_check
      _
    $region43: #{dueling_dqn_forward.1} parent=1 // pred_check_branch
      %84 = sbr.rel (0) target = $region45
    $region44: #{dueling_dqn_forward.1} parent=1 // pred_region
      %86 = dma.done [#allocation5], 2048
    $region45: #{dueling_dqn_forward.1} parent=1 // pred_fallthru
      _
    // Predicated region
    $region46: #{dueling_dqn_forward.1} parent=1 // pred_check
      _
    $region47: #{dueling_dqn_forward.1} parent=1 // pred_check_branch
      %88 = sbr.rel (0) target = $region49
    $region48: #{dueling_dqn_forward.1} parent=1 // pred_region
      %90 = dma.done [#allocation5], 4096
    $region49: #{dueling_dqn_forward.1} parent=1 // pred_fallthru
      _
    // Predicated region
    $region50: #{dueling_dqn_forward.1} parent=1 // pred_check
      _
    $region51: #{dueling_dqn_forward.1} parent=1 // pred_check_branch
      %92 = sbr.rel (0) target = $region53
    $region52: #{dueling_dqn_forward.1} parent=1 // pred_region
      %94 = dma.done [#allocation8], 4096
    $region53: #{dueling_dqn_forward.1} parent=1 // pred_fallthru
      _
    %v95 = vld [vmem:[%s0] sm:$0xff]
    %v96 = vld [vmem:[#allocation2] sm:$0xff]
    %v97 = vld [vmem:[#allocation2 + $0x8] sm:$0xff]
    %v98 = vld [vmem:[#allocation2 + $0x10] sm:$0xff]
    %v99 = vld [vmem:[#allocation2 + $0x18] sm:$0xff]
    %v100 = vld [vmem:[#allocation2 + $0x20] sm:$0xff]
    %v101 = vld [vmem:[#allocation2 + $0x28] sm:$0xff]
    %v102 = vld [vmem:[#allocation2 + $0x30] sm:$0xff]
    %v103 = vld [vmem:[#allocation2 + $0x38] sm:$0xff]
    %v104 = vld [vmem:[#allocation2 + $0x40] sm:$0xff]
    %v105 = vld [vmem:[#allocation2 + $0x48] sm:$0xff]
    %v106 = vld [vmem:[#allocation2 + $0x50] sm:$0xff]
    %v107 = vld [vmem:[#allocation2 + $0x58] sm:$0xff]
    %v108 = vld [vmem:[#allocation2 + $0x60] sm:$0xff]
    %v109 = vld [vmem:[#allocation2 + $0x68] sm:$0xff]
    %v110 = vld [vmem:[#allocation2 + $0x70] sm:$0xff]
    %v111 = vld [vmem:[#allocation2 + $0x78] sm:$0xff]
    %v112 = vld [vmem:[%s2] sm:$0x1]
    %v114 = vperm.slane %v112, 0
    %116 = vmatpush.msra.mxu0 %v111
    %117 = vmatpush.msra.mxu0 %v110
    %118 = vmatpush.msra.mxu0 %v109
    %119 = vmatpush.msra.mxu0 %v108
    %120 = vmatpush.msra.mxu0 %v107
    %121 = vmatpush.msra.mxu0 %v106
    %122 = vmatpush.msra.mxu0 %v105
    %123 = vmatpush.msra.mxu0 %v104
    %124 = vmatpush.msra.mxu0 %v103
    %125 = vmatpush.msra.mxu0 %v102
    %126 = vmatpush.msra.mxu0 %v101
    %127 = vmatpush.msra.mxu0 %v100
    %128 = vmatpush.msra.mxu0 %v99
    %129 = vmatpush.msra.mxu0 %v98
    %130 = vmatpush.msra.mxu0 %v97
    %131 = vmatpush.msra.mxu0 %v96
    %132 = vmatmul.f32.gmra.mxu0 %v95
    %v133 = vpop.f32.mrf.mxu0
    %v134 = vadd.f32 %v114, %v133
    %135 = vdwg.mxu0
    %v136 = vmax.f32 %v134, 0.0
    %v137 = vld [vmem:[#allocation4] sm:$0xff]
    %v138 = vld [vmem:[#allocation4 + $0x8] sm:$0xff]
    %v139 = vld [vmem:[#allocation4 + $0x10] sm:$0xff]
    %v140 = vld [vmem:[#allocation4 + $0x18] sm:$0xff]
    %v141 = vld [vmem:[#allocation4 + $0x20] sm:$0xff]
    %v142 = vld [vmem:[#allocation4 + $0x28] sm:$0xff]
    %v143 = vld [vmem:[#allocation4 + $0x30] sm:$0xff]
    %v144 = vld [vmem:[#allocation4 + $0x38] sm:$0xff]
    %v145 = vld [vmem:[#allocation4 + $0x40] sm:$0xff]
    %v146 = vld [vmem:[#allocation4 + $0x48] sm:$0xff]
    %v147 = vld [vmem:[#allocation4 + $0x50] sm:$0xff]
    %v148 = vld [vmem:[#allocation4 + $0x58] sm:$0xff]
    %v149 = vld [vmem:[#allocation4 + $0x60] sm:$0xff]
    %v150 = vld [vmem:[#allocation4 + $0x68] sm:$0xff]
    %v151 = vld [vmem:[#allocation4 + $0x70] sm:$0xff]
    %v152 = vld [vmem:[#allocation4 + $0x78] sm:$0xff]
    %v153 = vld [vmem:[%s4] sm:$0x1]
    %v155 = vperm.slane %v153, 0
    %157 = vmatpush.msra.mxu0 %v152
    %158 = vmatpush.msra.mxu0 %v151
    %159 = vmatpush.msra.mxu0 %v150
    %160 = vmatpush.msra.mxu0 %v149
    %161 = vmatpush.msra.mxu0 %v148
    %162 = vmatpush.msra.mxu0 %v147
    %163 = vmatpush.msra.mxu0 %v146
    %164 = vmatpush.msra.mxu0 %v145
    %165 = vmatpush.msra.mxu0 %v144
    %166 = vmatpush.msra.mxu0 %v143
    %167 = vmatpush.msra.mxu0 %v142
    %168 = vmatpush.msra.mxu0 %v141
    %169 = vmatpush.msra.mxu0 %v140
    %170 = vmatpush.msra.mxu0 %v139
    %171 = vmatpush.msra.mxu0 %v138
    %172 = vmatpush.msra.mxu0 %v137
    %173 = vmatmul.f32.gmra.mxu0 %v136
    %v174 = vpop.f32.mrf.mxu0
    %v175 = vadd.f32 %v155, %v174
    %176 = vdwg.mxu0
    %v177 = vmax.f32 %v175, 0.0
    %v178 = vld [vmem:[#allocation6] sm:$0xff]
    %v179 = vld [vmem:[#allocation6 + $0x8] sm:$0xff]
    %v180 = vld [vmem:[#allocation6 + $0x10] sm:$0xff]
    %v181 = vld [vmem:[#allocation6 + $0x18] sm:$0xff]
    %v182 = vld [vmem:[#allocation6 + $0x20] sm:$0xff]
    %v183 = vld [vmem:[#allocation6 + $0x28] sm:$0xff]
    %v184 = vld [vmem:[#allocation6 + $0x30] sm:$0xff]
    %v185 = vld [vmem:[#allocation6 + $0x38] sm:$0xff]
    %v186 = vld [vmem:[#allocation6 + $0x40] sm:$0xff]
    %v187 = vld [vmem:[#allocation6 + $0x48] sm:$0xff]
    %v188 = vld [vmem:[#allocation6 + $0x50] sm:$0xff]
    %v189 = vld [vmem:[#allocation6 + $0x58] sm:$0xff]
    %v190 = vld [vmem:[#allocation6 + $0x60] sm:$0xff]
    %v191 = vld [vmem:[#allocation6 + $0x68] sm:$0xff]
    %v192 = vld [vmem:[#allocation6 + $0x70] sm:$0xff]
    %v193 = vld [vmem:[#allocation6 + $0x78] sm:$0xff]
    %v194 = vld [vmem:[#allocation6 + $0x80] sm:$0xff]
    %v195 = vld [vmem:[#allocation6 + $0x88] sm:$0xff]
    %v196 = vld [vmem:[#allocation6 + $0x90] sm:$0xff]
    %v197 = vld [vmem:[#allocation6 + $0x98] sm:$0xff]
    %v198 = vld [vmem:[#allocation6 + $0xa0] sm:$0xff]
    %v199 = vld [vmem:[#allocation6 + $0xa8] sm:$0xff]
    %v200 = vld [vmem:[#allocation6 + $0xb0] sm:$0xff]
    %v201 = vld [vmem:[#allocation6 + $0xb8] sm:$0xff]
    %v202 = vld [vmem:[#allocation6 + $0xc0] sm:$0xff]
    %v203 = vld [vmem:[#allocation6 + $0xc8] sm:$0xff]
    %v204 = vld [vmem:[#allocation6 + $0xd0] sm:$0xff]
    %v205 = vld [vmem:[#allocation6 + $0xd8] sm:$0xff]
    %v206 = vld [vmem:[#allocation6 + $0xe0] sm:$0xff]
    %v207 = vld [vmem:[#allocation6 + $0xe8] sm:$0xff]
    %v208 = vld [vmem:[#allocation6 + $0xf0] sm:$0xff]
    %v209 = vld [vmem:[#allocation6 + $0xf8] sm:$0xff]
    %v210 = vld [vmem:[%s6] sm:$0x3]
    %v212 = vperm.slane %v210, 0
    %v213 = vperm.slane %v210, 1
    %216 = vmatpush.msra.mxu0 %v208
    %217 = vmatpush.msra.mxu0 %v206
    %218 = vmatpush.msra.mxu0 %v204
    %219 = vmatpush.msra.mxu0 %v202
    %220 = vmatpush.msra.mxu0 %v200
    %221 = vmatpush.msra.mxu0 %v198
    %222 = vmatpush.msra.mxu0 %v196
    %223 = vmatpush.msra.mxu0 %v194
    %224 = vmatpush.msra.mxu0 %v192
    %225 = vmatpush.msra.mxu0 %v190
    %226 = vmatpush.msra.mxu0 %v188
    %227 = vmatpush.msra.mxu0 %v186
    %228 = vmatpush.msra.mxu0 %v184
    %229 = vmatpush.msra.mxu0 %v182
    %230 = vmatpush.msra.mxu0 %v180
    %231 = vmatpush.msra.mxu0 %v178
    %232 = vmatmul.f32.gmra.mxu0 %v177
    %v233 = vpop.f32.mrf.mxu0
    %v234 = vadd.f32 %v212, %v233
    %235 = vdwg.mxu0
    %236 = vmatpush.msra.mxu0 %v209
    %237 = vmatpush.msra.mxu0 %v207
    %238 = vmatpush.msra.mxu0 %v205
    %239 = vmatpush.msra.mxu0 %v203
    %240 = vmatpush.msra.mxu0 %v201
    %241 = vmatpush.msra.mxu0 %v199
    %242 = vmatpush.msra.mxu0 %v197
    %243 = vmatpush.msra.mxu0 %v195
    %244 = vmatpush.msra.mxu0 %v193
    %245 = vmatpush.msra.mxu0 %v191
    %246 = vmatpush.msra.mxu0 %v189
    %247 = vmatpush.msra.mxu0 %v187
    %248 = vmatpush.msra.mxu0 %v185
    %249 = vmatpush.msra.mxu0 %v183
    %250 = vmatpush.msra.mxu0 %v181
    %251 = vmatpush.msra.mxu0 %v179
    %252 = vmatmul.f32.gmra.mxu0 %v177
    %v253 = vpop.f32.mrf.mxu0
    %v254 = vadd.f32 %v213, %v253
    %255 = vdwg.mxu0
    %v256 = vmax.f32 %v234, 0.0
    %v257 = vmax.f32 %v254, 0.0
    %v258 = vld [vmem:[#allocation7] sm:$0xff]
    %v259 = vld [vmem:[#allocation7 + $0x8] sm:$0xff]
    %v260 = vld [vmem:[#allocation7 + $0x10] sm:$0xff]
    %v261 = vld [vmem:[#allocation7 + $0x18] sm:$0xff]
    %v262 = vld [vmem:[#allocation7 + $0x20] sm:$0xff]
    %v263 = vld [vmem:[#allocation7 + $0x28] sm:$0xff]
    %v264 = vld [vmem:[#allocation7 + $0x30] sm:$0xff]
    %v265 = vld [vmem:[#allocation7 + $0x38] sm:$0xff]
    %v266 = vld [vmem:[#allocation7 + $0x40] sm:$0xff]
    %v267 = vld [vmem:[#allocation7 + $0x48] sm:$0xff]
    %v268 = vld [vmem:[#allocation7 + $0x50] sm:$0xff]
    %v269 = vld [vmem:[#allocation7 + $0x58] sm:$0xff]
    %v270 = vld [vmem:[#allocation7 + $0x60] sm:$0xff]
    %v271 = vld [vmem:[#allocation7 + $0x68] sm:$0xff]
    %v272 = vld [vmem:[#allocation7 + $0x70] sm:$0xff]
    %v273 = vld [vmem:[#allocation7 + $0x78] sm:$0xff]
    %v274 = vld [vmem:[#allocation7 + $0x80] sm:$0xff]
    %v275 = vld [vmem:[#allocation7 + $0x88] sm:$0xff]
    %v276 = vld [vmem:[#allocation7 + $0x90] sm:$0xff]
    %v277 = vld [vmem:[#allocation7 + $0x98] sm:$0xff]
    %v278 = vld [vmem:[#allocation7 + $0xa0] sm:$0xff]
    %v279 = vld [vmem:[#allocation7 + $0xa8] sm:$0xff]
    %v280 = vld [vmem:[#allocation7 + $0xb0] sm:$0xff]
    %v281 = vld [vmem:[#allocation7 + $0xb8] sm:$0xff]
    %v282 = vld [vmem:[#allocation7 + $0xc0] sm:$0xff]
    %v283 = vld [vmem:[#allocation7 + $0xc8] sm:$0xff]
    %v284 = vld [vmem:[#allocation7 + $0xd0] sm:$0xff]
    %v285 = vld [vmem:[#allocation7 + $0xd8] sm:$0xff]
    %v286 = vld [vmem:[#allocation7 + $0xe0] sm:$0xff]
    %v287 = vld [vmem:[#allocation7 + $0xe8] sm:$0xff]
    %v288 = vld [vmem:[#allocation7 + $0xf0] sm:$0xff]
    %v289 = vld [vmem:[#allocation7 + $0xf8] sm:$0xff]
    %v290 = vld [vmem:[%s8] sm:$0x1]
    %v292 = vperm.slane %v290, 0
    %294 = vmatpush.msra.mxu0 %v273
    %295 = vmatpush.msra.mxu0 %v272
    %296 = vmatpush.msra.mxu0 %v271
    %297 = vmatpush.msra.mxu0 %v270
    %298 = vmatpush.msra.mxu0 %v269
    %299 = vmatpush.msra.mxu0 %v268
    %300 = vmatpush.msra.mxu0 %v267
    %301 = vmatpush.msra.mxu0 %v266
    %302 = vmatpush.msra.mxu0 %v265
    %303 = vmatpush.msra.mxu0 %v264
    %304 = vmatpush.msra.mxu0 %v263
    %305 = vmatpush.msra.mxu0 %v262
    %306 = vmatpush.msra.mxu0 %v261
    %307 = vmatpush.msra.mxu0 %v260
    %308 = vmatpush.msra.mxu0 %v259
    %309 = vmatpush.msra.mxu0 %v258
    %310 = vmatmul.f32.gmra.mxu0 %v256
    %v311 = vpop.f32.mrf.mxu0
    %v312 = vadd.f32 %v292, %v311
    %313 = vdwg.mxu0
    %314 = vmatpush.msra.mxu0 %v289
    %315 = vmatpush.msra.mxu0 %v288
    %316 = vmatpush.msra.mxu0 %v287
    %317 = vmatpush.msra.mxu0 %v286
    %318 = vmatpush.msra.mxu0 %v285
    %319 = vmatpush.msra.mxu0 %v284
    %320 = vmatpush.msra.mxu0 %v283
    %321 = vmatpush.msra.mxu0 %v282
    %322 = vmatpush.msra.mxu0 %v281
    %323 = vmatpush.msra.mxu0 %v280
    %324 = vmatpush.msra.mxu0 %v279
    %325 = vmatpush.msra.mxu0 %v278
    %326 = vmatpush.msra.mxu0 %v277
    %327 = vmatpush.msra.mxu0 %v276
    %328 = vmatpush.msra.mxu0 %v275
    %329 = vmatpush.msra.mxu0 %v274
    %330 = vmatmul.f32.gmra.mxu0 %v257
    %v331 = vpop.f32.mrf.mxu0
    %v332 = vadd.f32 %v312, %v331
    %333 = vdwg.mxu0
    %334 = vst [vmem:[%s9] sm:$0xff] %v332
    // Predicated region
    $region54: #{dueling_dqn_forward.1} parent=1 // pred_check
      _
    $region55: #{dueling_dqn_forward.1} parent=1 // pred_check_branch
      %336 = sbr.rel (0) target = $region57
    $region56: #{dueling_dqn_forward.1} parent=1 // pred_region
      _
    $region57: #{dueling_dqn_forward.1} parent=1 // pred_fallthru
      _
    // Predicated region
    $region58: #{dueling_dqn_forward.1} parent=1 // pred_check
      _
    $region59: #{dueling_dqn_forward.1} parent=1 // pred_check_branch
      %338 = sbr.rel (0) target = $region61
    $region60: #{dueling_dqn_forward.1} parent=1 // pred_region
      _
    $region61: #{dueling_dqn_forward.1} parent=1 // pred_fallthru
      _
    %339 = vsyncpa [#allocation3], 1
    %340 = vsyncpa [#allocation5], 1
    %341 = vsyncpa [#allocation8], 1

</llo_original>
